<compile_context>
chip_gen: v6e
topology: v6e:2x2x1
jax: 0.10.0
libtpu: 0.0.40
codegen_flags: <defaults>
</compile_context>

<pallas_src>
import functools
import math

import jax
import jax.numpy as jnp
from jax import lax
from jax.experimental import pallas as pl
from jax.experimental.pallas import tpu as pltpu


def _adaface_kernel(emb_ref, w_ref, labval_ref, label_ref, out_ref, inv_norm_ref,
                    *, s, eps, tile_b, tile_c):
    c = pl.program_id(0)          # class-tile index (outer)
    b = pl.program_id(1)          # batch-tile index (inner)

    # s / ||W_col||, computed once per class tile on the MXU and cached in a
    # VMEM scratch that is reused for every batch tile of this class tile.
    @pl.when(b == 0)
    def _():
        w = w_ref[...]                                           # (E, TC) stored dtype
        ones = jnp.ones((1, w.shape[0]), dtype=w.dtype)
        sq = jnp.dot(ones, w * w, preferred_element_type=jnp.float32)   # (1, TC) f32
        inv_norm_ref[...] = s * lax.rsqrt(sq + 1e-20)

    row0 = pl.multiple_of(b * tile_b, tile_b)
    emb = emb_ref[pl.ds(row0, tile_b), :]                        # (TB, E)
    lab = label_ref[pl.ds(row0, tile_b), :]                      # (TB, 1) int32
    lab_val = labval_ref[pl.ds(row0, tile_b), :]                 # (TB, 1) f32 (already *s)

    # scaled cosine = (emb @ W_tile) * (s / ||W_col||), clipped like the ref.
    cos_s = jnp.dot(emb, w_ref[...], preferred_element_type=jnp.float32)
    cos_s = cos_s * inv_norm_ref[...]
    cos_s = jnp.clip(cos_s, (-1.0 + eps) * s, (1.0 - eps) * s)   # (TB, TC)

    # For non-label columns cos(clip(arccos(x), eps, pi-eps)) == x exactly, so
    # only the one-hot label column is replaced -- by the margin-adjusted
    # value precomputed per row in the wrapper.  Columns beyond C (ragged last
    # tile) never match any label and are dropped by the bounded writeback.
    cols = c * tile_c + lax.broadcasted_iota(jnp.int32, (tile_b, tile_c), 1)
    onehot = cols == lab
    out_ref[...] = jnp.where(onehot, lab_val, cos_s).astype(out_ref.dtype)


def adaface_forward(embeddings, norms, label, kernel,
                    *, m=0.4, h=0.333, s=64.0, t_alpha=1.0,
                    batch_mean=20.0, batch_std=100.0, eps=1e-3,
                    tile_c=2048, tile_b=128, out_dtype=jnp.float32):
    """AdaFace forward. Returns (scaled_cosine_m, new_batch_mean, new_batch_std).

    `kernel` is streamed in its stored dtype -- store it in bf16 to halve the
    dominant HBM read stream (no per-call cast/pad pass over W is done here).
    """
    B, E = embeddings.shape
    E2, C = kernel.shape
    assert E == E2
    assert tile_c % 128 == 0

    w_dtype = kernel.dtype
    emb_stream = embeddings.astype(w_dtype)          # what the Pallas kernel streams
    emb_f32 = emb_stream.astype(jnp.float32)         # for the tiny (B,1) label math

    # ---- batch statistics of feature norms (tiny, plain JAX glue) ----
    safe_norms = jnp.clip(norms.reshape(B, 1).astype(jnp.float32), 0.001, 100.0)
    mean = jnp.mean(safe_norms)
    std = (jnp.std(safe_norms, ddof=1) if B > 1
           else jnp.zeros((), jnp.float32))                      # guard B==1 (NaN)
    new_batch_mean = mean * t_alpha + (1.0 - t_alpha) * batch_mean
    new_batch_std = std * t_alpha + (1.0 - t_alpha) * batch_std
    margin_scaler = (safe_norms - new_batch_mean) / (new_batch_std + eps)
    margin_scaler = jnp.clip(margin_scaler * h, -1.0, 1.0)       # (B, 1)

    # ---- label-column margin math, O(B*E) glue (removes all transcendentals
    #      and the masked lane-reduce from the kernel epilogue) ----
    lab_i = label.reshape(-1).astype(jnp.int32)
    w_lab = jnp.take(kernel, lab_i, axis=1).astype(jnp.float32)  # (E, B) gather
    c_lab = jnp.sum(emb_f32 * w_lab.T, axis=1, keepdims=True)    # (B, 1)
    c_lab = c_lab * lax.rsqrt(jnp.sum(w_lab * w_lab, axis=0)[:, None] + 1e-20)
    c_lab = jnp.clip(c_lab, -1.0 + eps, 1.0 - eps)
    g_angular = -m * margin_scaler
    g_add = m + m * margin_scaler
    theta_m = jnp.clip(jnp.arccos(c_lab) + g_angular, eps, math.pi - eps)
    lab_val_s = ((jnp.cos(theta_m) - g_add) * s).astype(jnp.float32)   # (B, 1), already *s

    # ---- tile sizes, VMEM budget (generation-aware), batch padding ----
    tile_b = min(int(tile_b), ((B + 7) // 8) * 8)
    tile_b = max(8, (tile_b // 8) * 8)
    wbytes = jnp.dtype(w_dtype).itemsize
    obytes = jnp.dtype(out_dtype).itemsize

    def _vmem_need(tb, tc):
        bp = ((B + tb - 1) // tb) * tb
        return (2 * E * tc * wbytes                 # double-buffered weight tile
                + 2 * tb * tc * obytes              # double-buffered output tile
                + tc * 4                            # inv-norm scratch
                + 2 * (bp * E * wbytes + bp * 8)    # resident emb + labval + label
                + 6 * tb * tc * 4)                  # f32 epilogue temporaries

    try:
        vmem_cap = pltpu.get_tpu_info().vmem_capacity_bytes
    except Exception:
        vmem_cap = 128 * 1024 * 1024
    budget = (vmem_cap * 3) // 4
    while _vmem_need(tile_b, tile_c) > budget and tile_c >= 1024 and (tile_c // 2) % 128 == 0:
        tile_c //= 2
    while _vmem_need(tile_b, tile_c) > budget and tile_b >= 16:
        tile_b = max(8, ((tile_b // 2) // 8) * 8)
    vmem_limit = int(min(max(int(1.25 * _vmem_need(tile_b, tile_c)),
                             32 * 1024 * 1024), budget))

    Bp = ((B + tile_b - 1) // tile_b) * tile_b
    num_b = Bp // tile_b
    num_c = pl.cdiv(C, tile_c)                      # ragged last tile handled in-kernel

    lab2 = label.reshape(B, 1).astype(jnp.int32)
    labval = lab_val_s
    emb_in = emb_stream
    if Bp != B:
        emb_in = jnp.pad(emb_in, ((0, Bp - B), (0, 0)))
        labval = jnp.pad(labval, ((0, Bp - B), (0, 0)))
        lab2 = jnp.pad(lab2, ((0, Bp - B), (0, 0)), constant_values=-1)

    kernel_fn = functools.partial(_adaface_kernel, s=float(s), eps=float(eps),
                                  tile_b=tile_b, tile_c=tile_c)

    out = pl.pallas_call(
        kernel_fn,
        out_shape=jax.ShapeDtypeStruct((Bp, C), out_dtype),
        grid_spec=pltpu.PrefetchScalarGridSpec(
            num_scalar_prefetch=0,
            grid=(num_c, num_b),                    # class tiles outer, batch tiles inner
            in_specs=[
                pl.BlockSpec((Bp, E), lambda c, b: (0, 0)),       # embeddings (resident)
                pl.BlockSpec((E, tile_c), lambda c, b: (0, c)),   # weight column tile
                pl.BlockSpec((Bp, 1), lambda c, b: (0, 0)),       # label-column values
                pl.BlockSpec((Bp, 1), lambda c, b: (0, 0)),       # labels
            ],
            out_specs=pl.BlockSpec((tile_b, tile_c), lambda c, b: (b, c)),
            scratch_shapes=[pltpu.VMEM((1, tile_c), jnp.float32)],   # s/||w|| cache
        ),
        compiler_params=pltpu.CompilerParams(
            # batch axis must stay sequential on one core (scratch init at b==0)
            dimension_semantics=("parallel", "arbitrary"),
            vmem_limit_bytes=vmem_limit),
    )(emb_in, kernel, labval, lab2)

    return out[:B, :], new_batch_mean, new_batch_std


def _init_adaface_kernel(key, embedding_size, classnum):
    """Mimic kernel.data.uniform_(-1,1).renorm_(2,1,1e-5).mul_(1e5)."""
    w = jax.random.uniform(key, (embedding_size, classnum),
                           minval=-1.0, maxval=1.0, dtype=jnp.float32)
    col_norm = jnp.linalg.norm(w, axis=0, keepdims=True)
    factor = jnp.where(col_norm > 1e-5, 1e-5 / col_norm, 1.0)
    return w * factor * 1e5


def _reference(embeddings, norms, label, kernel, *, m=0.4, h=0.333, s=64.0,
               t_alpha=1.0, batch_mean=20.0, batch_std=100.0, eps=1e-3):
    kn = kernel / jnp.linalg.norm(kernel, axis=0, keepdims=True)
    cosine = jnp.clip(embeddings @ kn, -1 + eps, 1 - eps)
    safe_norms = jnp.clip(norms, 0.001, 100.0)
    mean = jnp.mean(safe_norms)
    std = jnp.std(safe_norms, ddof=1)
    bm = mean * t_alpha + (1 - t_alpha) * batch_mean
    bs = std * t_alpha + (1 - t_alpha) * batch_std
    ms = jnp.clip((safe_norms - bm) / (bs + eps) * h, -1.0, 1.0)
    onehot = jax.nn.one_hot(label, cosine.shape[1], dtype=jnp.float32)
    m_arc = onehot * (-m * ms)
    theta_m = jnp.clip(jnp.arccos(cosine) + m_arc, eps, math.pi - eps)
    cosine = jnp.cos(theta_m)
    m_cos = onehot * (m + m * ms)
    return (cosine - m_cos) * s


if __name__ == "__main__":
    # small shapes; C deliberately NOT a multiple of tile_c to exercise the
    # ragged last class tile (handled in-kernel, no weight padding pass).
    B, E, C = 8, 32, 1000
    TILE_C = 256

    key = jax.random.PRNGKey(0)
    k_kernel, k_emb, k_norm, k_lab = jax.random.split(key, 4)

    kernel_f32 = _init_adaface_kernel(k_kernel, E, C)
    # Production storage convention: keep the class prototypes in bf16 so the
    # kernel streams half the HBM bytes without any per-call cast/pad pass.
    kernel_bf16 = kernel_f32.astype(jnp.bfloat16)

    emb = jax.random.normal(k_emb, (B, E), dtype=jnp.float32)
    emb = emb / jnp.linalg.norm(emb, axis=1, keepdims=True)       # unit embeddings
    norms = jax.random.uniform(k_norm, (B, 1), minval=5.0, maxval=50.0,
                               dtype=jnp.float32)
    label = jax.random.randint(k_lab, (B,), 0, C, dtype=jnp.int32)

    out, bm, bs = adaface_forward(emb, norms, label, kernel_bf16, tile_c=TILE_C)
    out = jax.block_until_ready(out)
    assert out.shape == (B, C)

    # Reference computed with the same bf16 quantization the kernel streams.
    emb_q = emb.astype(jnp.bfloat16).astype(jnp.float32)
    ker_q = kernel_bf16.astype(jnp.float32)
    ref = _reference(emb_q, norms, label, ker_q)
    max_err = float(jnp.max(jnp.abs(out - ref)))
    assert jnp.allclose(out, ref, atol=7.5e-2, rtol=1e-2), \
        f"mismatch vs reference, max_err={max_err}"

    print("KERNEL_OK")
</pallas_src>

<mosaic_0001>
module attributes {stable_mosaic.version = 11 : i64} {
  func.func @_adaface_kernel(%arg0: i32, %arg1: i32, %arg2: memref<8x32xbf16, #tpu.memory_space<vmem>>, %arg3: memref<32x256xbf16, #tpu.memory_space<vmem>>, %arg4: memref<8x1xf32, #tpu.memory_space<vmem>>, %arg5: memref<8x1xi32, #tpu.memory_space<vmem>>, %arg6: memref<8x256xf32, #tpu.memory_space<vmem>>, %arg7: memref<1x256xf32, #tpu.memory_space<vmem>>) attributes {dimension_semantics = [#tpu.dimension_semantics<parallel>, #tpu.dimension_semantics<arbitrary>], iteration_bounds = array<i64: 4, 1>, scalar_prefetch = 0 : i64, scratch_operands = 1 : i64, tpu.core_type = #tpu.core_type<tc>, window_params = [{pipeline_mode = #tpu.pipeline_mode<synchronous>, transform_indices = @transform_0, window_bounds = array<i64: 8, 32>}, {transform_indices = @transform_1, window_bounds = array<i64: 32, 256>}, {pipeline_mode = #tpu.pipeline_mode<synchronous>, transform_indices = @transform_2, window_bounds = array<i64: 8, 1>}, {pipeline_mode = #tpu.pipeline_mode<synchronous>, transform_indices = @transform_3, window_bounds = array<i64: 8, 1>}, {transform_indices = @transform_4, window_bounds = array<i64: 8, 256>}]} {
    %c0_i32 = arith.constant 0 : i32
    %0 = arith.cmpi eq, %arg1, %c0_i32 : i32
    %1 = arith.extui %0 : i1 to i32
    %c0_i32_0 = arith.constant 0 : i32
    %2 = arith.cmpi ne, %1, %c0_i32_0 : i32
    scf.if %2 {
      %c0_11 = arith.constant 0 : index
      %c0_12 = arith.constant 0 : index
      %30 = vector.load %arg3[%c0_11, %c0_12] : memref<32x256xbf16, #tpu.memory_space<vmem>>, vector<32x256xbf16>
      %cst_13 = arith.constant 1.000000e+00 : bf16
      %31 = vector.broadcast %cst_13 : bf16 to vector<1x32xbf16>
      %32 = arith.mulf %30, %30 : vector<32x256xbf16>
      %cst_14 = arith.constant dense<0.000000e+00> : vector<1x256xf32>
      %33 = tpu.matmul %31, %32, %cst_14 {dimension_numbers = #tpu.dot_dimension_numbers<[1], [0], [0], [1], [0, 0, 1, 1], [], []>} : vector<1x32xbf16>, vector<32x256xbf16>, vector<1x256xf32> -> vector<1x256xf32>
      %cst_15 = arith.constant 9.99999968E-21 : f32
      %34 = vector.broadcast %cst_15 : f32 to vector<1x256xf32>
      %35 = arith.addf %33, %34 : vector<1x256xf32>
      %36 = math.rsqrt %35 : vector<1x256xf32>
      %cst_16 = arith.constant 6.400000e+01 : f32
      %37 = vector.broadcast %cst_16 : f32 to vector<1x256xf32>
      %38 = arith.mulf %37, %36 : vector<1x256xf32>
      %c0_17 = arith.constant 0 : index
      %c0_18 = arith.constant 0 : index
      %39 = vector.load %arg7[%c0_17, %c0_18] : memref<1x256xf32, #tpu.memory_space<vmem>>, vector<1x256xf32>
      tpu.vector_store %arg7[%c0_17, %c0_18], %38 {strides = array<i32>} : memref<1x256xf32, #tpu.memory_space<vmem>>, vector<1x256xf32>,
    } else {
    }
    %c8_i32 = arith.constant 8 : i32
    %3 = arith.muli %arg1, %c8_i32 : i32
    %4 = tpu.assume_multiple %3, 8 : i32
    %5 = arith.index_cast %4 : i32 to index
    %c0 = arith.constant 0 : index
    %6 = vector.load %arg2[%5, %c0] : memref<8x32xbf16, #tpu.memory_space<vmem>>, vector<8x32xbf16>
    %7 = arith.index_cast %4 : i32 to index
    %c0_1 = arith.constant 0 : index
    %8 = vector.load %arg5[%7, %c0_1] : memref<8x1xi32, #tpu.memory_space<vmem>>, vector<8x1xi32>
    %9 = arith.index_cast %4 : i32 to index
    %c0_2 = arith.constant 0 : index
    %10 = vector.load %arg4[%9, %c0_2] : memref<8x1xf32, #tpu.memory_space<vmem>>, vector<8x1xf32>
    %c0_3 = arith.constant 0 : index
    %c0_4 = arith.constant 0 : index
    %11 = vector.load %arg3[%c0_3, %c0_4] : memref<32x256xbf16, #tpu.memory_space<vmem>>, vector<32x256xbf16>
    %cst = arith.constant dense<0.000000e+00> : vector<8x256xf32>
    %12 = tpu.matmul %6, %11, %cst {dimension_numbers = #tpu.dot_dimension_numbers<[1], [0], [0], [1], [0, 0, 1, 1], [], []>} : vector<8x32xbf16>, vector<32x256xbf16>, vector<8x256xf32> -> vector<8x256xf32>
    %c0_5 = arith.constant 0 : index
    %c0_6 = arith.constant 0 : index
    %13 = vector.load %arg7[%c0_5, %c0_6] : memref<1x256xf32, #tpu.memory_space<vmem>>, vector<1x256xf32>
    %14 = vector.broadcast %13 : vector<1x256xf32> to vector<8x256xf32>
    %15 = arith.mulf %12, %14 : vector<8x256xf32>
    %cst_7 = arith.constant -6.393600e+01 : f32
    %cst_8 = arith.constant 6.393600e+01 : f32
    %16 = vector.broadcast %cst_7 : f32 to vector<8x256xf32>
    %17 = arith.maximumf %16, %15 : vector<8x256xf32>
    %18 = vector.broadcast %cst_8 : f32 to vector<8x256xf32>
    %19 = arith.minimumf %18, %17 : vector<8x256xf32>
    %c256_i32 = arith.constant 256 : i32
    %20 = arith.muli %arg0, %c256_i32 : i32
    %21 = tpu.iota {dimensions = array<i32: 1>} : vector<8x256xi32>
    %22 = vector.broadcast %20 : i32 to vector<8x256xi32>
    %23 = arith.addi %22, %21 : vector<8x256xi32>
    %24 = vector.broadcast %8 : vector<8x1xi32> to vector<8x256xi32>
    %25 = arith.cmpi eq, %23, %24 : vector<8x256xi32>
    %26 = vector.shape_cast %10 : vector<8x1xf32> to vector<8x1xf32>
    %27 = vector.broadcast %26 : vector<8x1xf32> to vector<8x256xf32>
    %28 = arith.select %25, %27, %19 : vector<8x256xi1>, vector<8x256xf32>
    %c0_9 = arith.constant 0 : index
    %c0_10 = arith.constant 0 : index
    %29 = vector.load %arg6[%c0_9, %c0_10] : memref<8x256xf32, #tpu.memory_space<vmem>>, vector<8x256xf32>
    tpu.vector_store %arg6[%c0_9, %c0_10], %28 {strides = array<i32>} : memref<8x256xf32, #tpu.memory_space<vmem>>, vector<8x256xf32>,
    return
  }
  func.func @transform_0(%arg0: i32, %arg1: i32) -> (i32, i32) {
    %c0_i32 = arith.constant 0 : i32
    %c0_i32_0 = arith.constant 0 : i32
    %c0_i32_1 = arith.constant 0 : i32
    return %c0_i32, %c0_i32_0 : i32, i32
  }
  func.func @transform_1(%arg0: i32, %arg1: i32) -> (i32, i32) {
    %c0_i32 = arith.constant 0 : i32
    %c0_i32_0 = arith.constant 0 : i32
    return %c0_i32, %arg0 : i32, i32
  }
  func.func @transform_2(%arg0: i32, %arg1: i32) -> (i32, i32) {
    %c0_i32 = arith.constant 0 : i32
    %c0_i32_0 = arith.constant 0 : i32
    %c0_i32_1 = arith.constant 0 : i32
    return %c0_i32, %c0_i32_0 : i32, i32
  }
  func.func @transform_3(%arg0: i32, %arg1: i32) -> (i32, i32) {
    %c0_i32 = arith.constant 0 : i32
    %c0_i32_0 = arith.constant 0 : i32
    %c0_i32_1 = arith.constant 0 : i32
    return %c0_i32, %c0_i32_0 : i32, i32
  }
  func.func @transform_4(%arg0: i32, %arg1: i32) -> (i32, i32) {
    %c0_i32 = arith.constant 0 : i32
    return %arg1, %arg0 : i32, i32
  }
}

</mosaic_0001>

<llo_original>
// kernel: tpu_custom_call.1
$region0: #{tpu_custom_call.1}
  #allocation0 [shape = 'u32[]', space=smem, size = 0x4, offset = 0x4, fixed_abs, tag = 'smem constant byte address 0x4 - core index']
  #allocation1 [shape = 'u32[144,128]{1,0:T(1,128)}', space=vmem, size = 0x12000, scoped, tag = 'internal scratch']
  #allocation2 [shape = 'f32[1,256]{1,0:T(1,128)}', space=vmem, size = 0x400, scoped, tag = 'scratch operand']
  %s0 = inlined_call_operand.vmem [shape: bf16[8,32], index: 0, kind: input, shape index: {}]
  %s1 = inlined_call_operand.hbm [shape: bf16[32,1000], index: 1, kind: input, shape index: {}]
  %s2 = inlined_call_operand.vmem [shape: f32[8,1], index: 2, kind: input, shape index: {}]
  %s3 = inlined_call_operand.vmem [shape: s32[8,1], index: 3, kind: input, shape index: {}]
  %s4 = inlined_call_operand.hbm [shape: f32[8,1000], index: 4, kind: output, shape index: {}]
  %s5 = sld [smem:[#allocation0]]
  $region57: #{tpu_custom_call.1} parent=0
    _
  %s7 = ssub.s32 1, %s5
  %s8 = scalar_select 0, %s7, %s5
  $region1: #{tpu_custom_call.1} parent=0
    #allocation3 [shape = 'u8[32768]{0}', space=vmem, size = 0x8000, scoped, tag = 'input window, operand 1']
    #allocation4 [shape = 's32[2]{0}', space=sflag, size = 0x8, scoped, tag = 'scoped memory for tpu_custom_call.1']
    #allocation5 [shape = 's32[2]{0}', space=sflag, size = 0x8, scoped, tag = 'scoped memory for tpu_custom_call.1']
    #allocation6 [shape = 'u8[16384]{0}', space=vmem, size = 0x4000, scoped, tag = 'output window, operand 0']
    %9 = vsyncpa [#allocation4], 0
    %s10 = scalar_lea.sflag [#allocation4], 1
    %11 = vsyncpa %s10, 0
    %12 = vsyncpa [#allocation5], 0
    %s13 = scalar_lea.sflag [#allocation5], 1
    %14 = vsyncpa %s13, 0
    loop: start=0, step=1, limit=6
    $region2: #{tpu_custom_call.1} parent=1 // loop_pre_header
      _
    $region3: #{tpu_custom_call.1} parent=1 // loop_header
      %s16 = sphi 0, %s20
      %p17 = scmp.ge.s32.totalorder %s16, 6
      %s23 = sphi 0, %s35
      %s24 = sphi 0, %s31
      %s25 = sphi 0, %s23
      %s26 = sphi 0, %s24
      %s27 = sphi 0, %s25
      %s28 = sphi 0, %s26
      %s36 = sphi 0, %s36
      %s38 = sphi 0, %s36
      %s39 = sphi 0, %s38
      %s53 = sphi 0, %s39
      %s59 = sphi 0, %s61
      %s62 = sphi 0, %s59
      %s63 = sphi 0, %s62
      %s79 = sphi 0, %s63
      %s83 = sphi 0, %s83
      %s85 = sphi 0, %s83
      %s86 = sphi 0, %s85
      %s100 = sphi 0, %s86
      %s104 = sphi 0, %s104
      %s106 = sphi 0, %s104
      %s107 = sphi 0, %s106
      %s121 = sphi 0, %s107
      %s129 = sphi 0, %s131
      %s132 = sphi 0, %s129
      %s133 = sphi 0, %s132
      %s149 = sphi 0, %s133
    $region4: #{tpu_custom_call.1} parent=1 // loop_header_branch
      %19 = sbr.rel (%p17) target = $region8
    $region5: #{tpu_custom_call.1} parent=1 // loop_body
      %s21 = ssub.s32 %s16, 1
      %s22 = ssub.s32 %s16, 2
      %s29 = sadd.s32 1, %s24
      %p30 = scmp.ge.s32.totalorder %s29, 1
      %s31 = scalar_select %p30, 0, %s29
      %s32 = sadd.s32 1, %s23
      %s33 = scalar_select %p30, %s32, %s23
      %p34 = scmp.ge.s32.totalorder %s33, 4
      %s35 = scalar_select %p34, 0, %s33
      %s37 = sadd.s32 %s36, 1
      %p40 = scmp.eq.s32.totalorder %s16, 3
      %p41 = scmp.ne.s32.totalorder %s36, %s38
      %p42 = scmp.eq.s32.totalorder %s16, 0
      %p43 = por %p41, %p42
      %p44 = scmp.ne.s32.totalorder %s36, %s38
      %p45 = scmp.eq.s32.totalorder %s21, 3
      %p46 = por %p44, %p45
      %p47 = scmp.ne.s32.totalorder %s38, %s39
      %p48 = scmp.eq.s32.totalorder %s21, 0
      %p49 = por %p47, %p48
      %p50 = scmp.ne.s32.totalorder %s38, %s39
      %p51 = scmp.eq.s32.totalorder %s22, 3
      %p52 = por %p50, %p51
      %p54 = scmp.ne.s32.totalorder %s39, %s53
      %p55 = scmp.eq.s32.totalorder %s22, 0
      %p56 = por %p54, %p55
      %s57 = ssub.s32 %s23, %s35
      %p58 = scmp.eq.s32.totalorder %s57, 0
      %s60 = sadd.s32 %s59, 1
      %s61 = scalar_select %p58, %s59, %s60
      %p64 = pneg %p58
      %p65 = scmp.eq.s32.totalorder %s16, 3
      %p66 = por %p64, %p65
      %p67 = scmp.ne.s32.totalorder %s59, %s62
      %p68 = scmp.eq.s32.totalorder %s16, 0
      %p69 = por %p67, %p68
      %p70 = scmp.ne.s32.totalorder %s59, %s62
      %p71 = scmp.eq.s32.totalorder %s21, 3
      %p72 = por %p70, %p71
      %p73 = scmp.ne.s32.totalorder %s62, %s63
      %p74 = scmp.eq.s32.totalorder %s21, 0
      %p75 = por %p73, %p74
      %p76 = scmp.ne.s32.totalorder %s62, %s63
      %p77 = scmp.eq.s32.totalorder %s22, 3
      %p78 = por %p76, %p77
      %p80 = scmp.ne.s32.totalorder %s63, %s79
      %p81 = scmp.eq.s32.totalorder %s22, 0
      %p82 = por %p80, %p81
      %s84 = sadd.s32 %s83, 1
      %p87 = scmp.eq.s32.totalorder %s16, 3
      %p88 = scmp.ne.s32.totalorder %s83, %s85
      %p89 = scmp.eq.s32.totalorder %s16, 0
      %p90 = por %p88, %p89
      %p91 = scmp.ne.s32.totalorder %s83, %s85
      %p92 = scmp.eq.s32.totalorder %s21, 3
      %p93 = por %p91, %p92
      %p94 = scmp.ne.s32.totalorder %s85, %s86
      %p95 = scmp.eq.s32.totalorder %s21, 0
      %p96 = por %p94, %p95
      %p97 = scmp.ne.s32.totalorder %s85, %s86
      %p98 = scmp.eq.s32.totalorder %s22, 3
      %p99 = por %p97, %p98
      %p101 = scmp.ne.s32.totalorder %s86, %s100
      %p102 = scmp.eq.s32.totalorder %s22, 0
      %p103 = por %p101, %p102
      %s105 = sadd.s32 %s104, 1
      %p108 = scmp.eq.s32.totalorder %s16, 3
      %p109 = scmp.ne.s32.totalorder %s104, %s106
      %p110 = scmp.eq.s32.totalorder %s16, 0
      %p111 = por %p109, %p110
      %p112 = scmp.ne.s32.totalorder %s104, %s106
      %p113 = scmp.eq.s32.totalorder %s21, 3
      %p114 = por %p112, %p113
      %p115 = scmp.ne.s32.totalorder %s106, %s107
      %p116 = scmp.eq.s32.totalorder %s21, 0
      %p117 = por %p115, %p116
      %p118 = scmp.ne.s32.totalorder %s106, %s107
      %p119 = scmp.eq.s32.totalorder %s22, 3
      %p120 = por %p118, %p119
      %p122 = scmp.ne.s32.totalorder %s107, %s121
      %p123 = scmp.eq.s32.totalorder %s22, 0
      %p124 = por %p122, %p123
      %s125 = ssub.s32 %s24, %s31
      %s126 = ssub.s32 %s23, %s35
      %s127 = sor.u32 %s125, %s126
      %p128 = scmp.eq.s32.totalorder %s127, 0
      %s130 = sadd.s32 %s129, 1
      %s131 = scalar_select %p128, %s129, %s130
      %p134 = pneg %p128
      %p135 = scmp.eq.s32.totalorder %s16, 3
      %p136 = por %p134, %p135
      %p137 = scmp.ne.s32.totalorder %s129, %s132
      %p138 = scmp.eq.s32.totalorder %s16, 0
      %p139 = por %p137, %p138
      %p140 = scmp.ne.s32.totalorder %s129, %s132
      %p141 = scmp.eq.s32.totalorder %s21, 3
      %p142 = por %p140, %p141
      %p143 = scmp.ne.s32.totalorder %s132, %s133
      %p144 = scmp.eq.s32.totalorder %s21, 0
      %p145 = por %p143, %p144
      %p146 = scmp.ne.s32.totalorder %s132, %s133
      %p147 = scmp.eq.s32.totalorder %s22, 3
      %p148 = por %p146, %p147
      %p150 = scmp.ne.s32.totalorder %s133, %s149
      %p151 = scmp.eq.s32.totalorder %s22, 0
      %p152 = por %p150, %p151
      %p153 = scmp.le.s32.totalorder 1, %s16
      %p154 = scmp.lt.s32.totalorder %s16, 5
      %p155 = pnand %p153, %p154
      %p156 = pneg %p155
      // Predicated region
      $region9: #{tpu_custom_call.1} parent=5 // pred_check
        _
      $region10: #{tpu_custom_call.1} parent=5 // pred_check_branch
        %158 = sbr.rel (%p155) target = $region12
      $region11: #{tpu_custom_call.1} parent=5 // pred_region
        %s159 = ssub.s32 %s16, 1
        // Predicated region
        $region13: #{tpu_custom_call.1} parent=11 // pred_check
          %p160 = pneg %p49
        $region14: #{tpu_custom_call.1} parent=11 // pred_check_branch
          %162 = sbr.rel (%p160) target = $region16
        $region15: #{tpu_custom_call.1} parent=11 // pred_region
          _
        $region16: #{tpu_custom_call.1} parent=11 // pred_fallthru
          _
        // Predicated region
        $region17: #{tpu_custom_call.1} parent=11 // pred_check
          %p163 = pneg %p96
        $region18: #{tpu_custom_call.1} parent=11 // pred_check_branch
          %165 = sbr.rel (%p163) target = $region20
        $region19: #{tpu_custom_call.1} parent=11 // pred_region
          _
        $region20: #{tpu_custom_call.1} parent=11 // pred_fallthru
          _
        // Predicated region
        $region21: #{tpu_custom_call.1} parent=11 // pred_check
          %p166 = pneg %p117
        $region22: #{tpu_custom_call.1} parent=11 // pred_check_branch
          %168 = sbr.rel (%p166) target = $region24
        $region23: #{tpu_custom_call.1} parent=11 // pred_region
          _
        $region24: #{tpu_custom_call.1} parent=11 // pred_fallthru
          _
      $region12: #{tpu_custom_call.1} parent=5 // pred_fallthru
        _
      %p169 = scmp.lt.s32.totalorder %s16, 4
      // Predicated region
      $region25: #{tpu_custom_call.1} parent=5 // pred_check
        %p170 = pneg %p169
      $region26: #{tpu_custom_call.1} parent=5 // pred_check_branch
        %172 = sbr.rel (%p170) target = $region28
      $region27: #{tpu_custom_call.1} parent=5 // pred_region
        // Predicated region
        $region29: #{tpu_custom_call.1} parent=27 // pred_check
          %p173 = pneg %p69
        $region30: #{tpu_custom_call.1} parent=27 // pred_check_branch
          %175 = sbr.rel (%p173) target = $region32
        $region31: #{tpu_custom_call.1} parent=27 // pred_region
          %s176 = sand.u32 %s59, 1
          %s177 = scalar_lea.sflag [#allocation4], %s176
          %s178 = sand.u32 %s59, 1
          %s179 = smul.addr %s178, 32
          %s180 = scalar_lea.vmem [#allocation3], %s179
          %s181 = smul.u32 2, %s23
          %s183 = ssub.s32 512, 512
          %184 = vsyncadd %s177, %s183
          %s185 = smul.addr %s181, 64
          %s186 = scalar_lea.hbm %s1, %s185
          %s187 = sshll.u32 %s180, 4
          %s188 = int_to_ptr.vmem [resolvable:$true] %s187
          %193 = dma.hbm_to_vmem [thread:$0]  %s186, 512, %s188, %s177, 512, 128, 8
        $region32: #{tpu_custom_call.1} parent=27 // pred_fallthru
          _
      $region28: #{tpu_custom_call.1} parent=5 // pred_fallthru
        _
      %p194 = scmp.le.s32.totalorder 1, %s16
      %p195 = scmp.lt.s32.totalorder %s16, 5
      %p196 = pnand %p194, %p195
      %p197 = pneg %p196
      // Predicated region
      $region33: #{tpu_custom_call.1} parent=5 // pred_check
        _
      $region34: #{tpu_custom_call.1} parent=5 // pred_check_branch
        %199 = sbr.rel (%p196) target = $region36
      $region35: #{tpu_custom_call.1} parent=5 // pred_region
        %s200 = ssub.s32 %s16, 1
        %s201 = sand.u32 %s62, 1
        %s202 = scalar_lea.sflag [#allocation4], %s201
        %s203 = sand.u32 %s62, 1
        %s204 = smul.addr %s203, 32
        %s205 = scalar_lea.vmem [#allocation3], %s204
        // Predicated region
        $region37: #{tpu_custom_call.1} parent=35 // pred_check
          %p206 = pneg %p75
        $region38: #{tpu_custom_call.1} parent=35 // pred_check_branch
          %208 = sbr.rel (%p206) target = $region40
        $region39: #{tpu_custom_call.1} parent=35 // pred_region
          %209 = dma.done %s202, 512
        $region40: #{tpu_custom_call.1} parent=35 // pred_fallthru
          _
        %p210 = pneg %p49
        %p211 = pneg %p46
        %s212 = sand.u32 %s62, 1
        %s213 = scalar_lea.sflag [#allocation4], %s212
        %s214 = sand.u32 %s62, 1
        %s215 = smul.addr %s214, 32
        %s216 = scalar_lea.vmem [#allocation3], %s215
        %p217 = pneg %p75
        %p218 = pneg %p72
        %p219 = pneg %p96
        %p220 = pneg %p93
        %p221 = pneg %p117
        %p222 = pneg %p114
        %p223 = pneg %p145
        %p224 = pneg %p142
        %s225 = sand.u32 %s132, 1
        %s226 = scalar_lea.sflag [#allocation5], %s225
        %s227 = sand.u32 %s132, 1
        %s228 = smul.addr %s227, 16
        %s229 = scalar_lea.vmem [#allocation6], %s228
        %s230 = smul.u32 2, %s25
        %s231 = smul.u32 2, %s25
        %p234 = scmp.eq.s32.totalorder %s26, 0
        // Predicated region
        $region41: #{tpu_custom_call.1} parent=35 // pred_check
          %p235 = pneg %p234
        $region42: #{tpu_custom_call.1} parent=35 // pred_check_branch
          %237 = sbr.rel (%p235) target = $region44
        $region43: #{tpu_custom_call.1} parent=35 // pred_region
          %v238 = vld [vmem:[%s205] sm:$0xff]
          %v239 = vld [vmem:[%s205 + $0x8] sm:$0xff]
          %v240 = vld [vmem:[%s205 + $0x10] sm:$0xff]
          %v241 = vld [vmem:[%s205 + $0x18] sm:$0xff]
          %v242 = vmul.bf16 %v238, %v238
          %v243 = vmul.bf16 %v239, %v239
          %v244 = vmul.bf16 %v240, %v240
          %v245 = vmul.bf16 %v241, %v241
          %v250 = vunpack.c.l.b16 %v242
          %v251 = vunpack.c.h.b16 %v242
          %v252 = vunpack.c.l.b16 %v243
          %v253 = vunpack.c.h.b16 %v243
          %v254 = vunpack.c.l.b16 %v244
          %v255 = vunpack.c.h.b16 %v244
          %v256 = vunpack.c.l.b16 %v245
          %v257 = vunpack.c.h.b16 %v245
          %v258 = vpack.c.b16 %v252, %v250
          %v259 = vpack.c.b16 %v253, %v251
          %v260 = vpack.c.b16 %v256, %v254
          %v261 = vpack.c.b16 %v257, %v255
          %vm266 = vcmask 261120
          %v268 = vsel %vm266, 1065369472, 0
          %270 = vmatprep.subr.bf16.mxu0 0
          %271 = vmatpush1.bf16.msra.mxu0 0
          %272 = vmatprep.subr.bf16.mxu0 0
          %273 = vmatpush1.bf16.msra.mxu0 0
          %274 = vmatprep.subr.bf16.mxu0 0
          %275 = vmatpush1.bf16.msra.mxu0 0
          %276 = vmatprep.subr.bf16.mxu0 0
          %277 = vmatpush1.bf16.msra.mxu0 0
          %278 = vmatprep.subr.bf16.mxu0 0
          %279 = vmatpush1.bf16.msra.mxu0 0
          %280 = vmatprep.subr.bf16.mxu0 0
          %281 = vmatpush1.bf16.msra.mxu0 0
          %282 = vmatprep.subr.bf16.mxu0 %v261
          %283 = vmatpush1.bf16.msra.mxu0 %v260
          %284 = vmatprep.subr.bf16.mxu0 %v259
          %285 = vmatpush1.bf16.msra.mxu0 %v258
          %286 = vmatprep.subr.bf16.mxu0 0
          %287 = vmatpush2.bf16.msra.mxu0 0
          %288 = vmatprep.subr.bf16.mxu0 0
          %289 = vmatpush2.bf16.msra.mxu0 0
          %290 = vmatprep.subr.bf16.mxu0 0
          %291 = vmatpush2.bf16.msra.mxu0 0
          %292 = vmatprep.subr.bf16.mxu0 0
          %293 = vmatpush2.bf16.msra.mxu0 0
          %294 = vmatprep.subr.bf16.mxu0 0
          %295 = vmatpush2.bf16.msra.mxu0 0
          %296 = vmatprep.subr.bf16.mxu0 0
          %297 = vmatpush2.bf16.msra.mxu0 0
          %298 = vmatprep.subr.bf16.mxu0 0
          %299 = vmatpush2.bf16.msra.mxu0 0
          %300 = vmatprep.subr.bf16.mxu0 0
          %301 = vmatpush2.bf16.msra.mxu0 0
          %302 = vmatprep.mubr.bf16.mxu0 0
          %303 = vmatmul.mubr.bf16.gmra.mxu0 %v268
          %v304 = vpop.f32.mrf.mxu0
          %v305 = vadd.f32 1e-20, %v304
          %v306 = vpop.f32.mrf.mxu0
          %v307 = vadd.f32 1e-20, %v306
          %v308 = vpop.f32.mrf.mxu0
          %v309 = vpop.f32.mrf.mxu0
          %310 = vdwg.mxu0
          %v311 = vrsqrt.pop %v305
          %v312 = vrsqrt.pop %v307
          %v313 = vmul.f32 %v311, 64.0
          %v314 = vmul.f32 %v312, 64.0
          %v317 = vcombine.low %v313, %v314
          %v319 = vunpack.c.l.s4 1966171168
          %v320 = vunpack.c.0.s8 %v319
          %v321 = vlaneseq
          %v322 = vshrl.u32 %v321, 7
          %v323 = vsub.s32 %v320, %v322
          %v324 = vrot.slane %v317, %v323
          %v326 = vunpack.c.l.s4 1966171168
          %v327 = vunpack.c.0.s8 %v326
          %v328 = vlaneseq
          %v329 = vshrl.u32 %v328, 7
          %v330 = vsub.s32 %v327, %v329
          %v331 = vrot.slane %v324, %v330
          %v333 = vlaneseq
          %vm334 = vcmp.ge.s32.totalorder %v333, 0
          %vm335 = vcmp.lt.s32.totalorder %v333, 256
          %vm336 = vmand %vm334, %vm335
          %337 = vst.msk [vmem:[#allocation2] sm:$0x3] %vm336, %v331
        $region44: #{tpu_custom_call.1} parent=35 // pred_fallthru
          _
        %s338 = smul.u32 %s26, 8
        %s339 = sshra.s32 %s338, 3
        %s340 = sand.u32 %s338, 7
        %s341 = smul.addr %s339, 4
        %s342 = scalar_lea.vmem %s0, %s341
        %v343 = vld [vmem:[%s342] sm:$0xf]
        %s344 = scalar_lea.vmem %s3, %s338
        %v345 = vld [vmem:[%s344] sm:$0xff]
        %s346 = scalar_lea.vmem %s2, %s338
        %v347 = vld [vmem:[%s346] sm:$0xff]
        %v348 = vld [vmem:[%s205] sm:$0xff]
        %v349 = vld [vmem:[%s205 + $0x8] sm:$0xff]
        %v350 = vld [vmem:[%s205 + $0x10] sm:$0xff]
        %v351 = vld [vmem:[%s205 + $0x18] sm:$0xff]
        %v356 = vunpack.c.l.b16 %v348
        %v357 = vunpack.c.h.b16 %v348
        %v358 = vunpack.c.l.b16 %v349
        %v359 = vunpack.c.h.b16 %v349
        %v360 = vunpack.c.l.b16 %v350
        %v361 = vunpack.c.h.b16 %v350
        %v362 = vunpack.c.l.b16 %v351
        %v363 = vunpack.c.h.b16 %v351
        %v364 = vpack.c.b16 %v358, %v356
        %v365 = vpack.c.b16 %v359, %v357
        %v366 = vpack.c.b16 %v362, %v360
        %v367 = vpack.c.b16 %v363, %v361
        %vm372 = vcmask 261120
        %v374 = vsel %vm372, %v343, 0
        %376 = vmatprep.subr.bf16.mxu0 0
        %377 = vmatpush1.bf16.msra.mxu0 0
        %378 = vmatprep.subr.bf16.mxu0 0
        %379 = vmatpush1.bf16.msra.mxu0 0
        %380 = vmatprep.subr.bf16.mxu0 0
        %381 = vmatpush1.bf16.msra.mxu0 0
        %382 = vmatprep.subr.bf16.mxu0 0
        %383 = vmatpush1.bf16.msra.mxu0 0
        %384 = vmatprep.subr.bf16.mxu0 0
        %385 = vmatpush1.bf16.msra.mxu0 0
        %386 = vmatprep.subr.bf16.mxu0 0
        %387 = vmatpush1.bf16.msra.mxu0 0
        %388 = vmatprep.subr.bf16.mxu0 %v367
        %389 = vmatpush1.bf16.msra.mxu0 %v366
        %390 = vmatprep.subr.bf16.mxu0 %v365
        %391 = vmatpush1.bf16.msra.mxu0 %v364
        %392 = vmatprep.subr.bf16.mxu0 0
        %393 = vmatpush2.bf16.msra.mxu0 0
        %394 = vmatprep.subr.bf16.mxu0 0
        %395 = vmatpush2.bf16.msra.mxu0 0
        %396 = vmatprep.subr.bf16.mxu0 0
        %397 = vmatpush2.bf16.msra.mxu0 0
        %398 = vmatprep.subr.bf16.mxu0 0
        %399 = vmatpush2.bf16.msra.mxu0 0
        %400 = vmatprep.subr.bf16.mxu0 0
        %401 = vmatpush2.bf16.msra.mxu0 0
        %402 = vmatprep.subr.bf16.mxu0 0
        %403 = vmatpush2.bf16.msra.mxu0 0
        %404 = vmatprep.subr.bf16.mxu0 0
        %405 = vmatpush2.bf16.msra.mxu0 0
        %406 = vmatprep.subr.bf16.mxu0 0
        %407 = vmatpush2.bf16.msra.mxu0 0
        %408 = vmatprep.mubr.bf16.mxu0 0
        %409 = vmatmul.mubr.bf16.gmra.mxu0 %v374
        %v410 = vpop.f32.mrf.mxu0
        %v411 = vadd.f32 0.0, %v410
        %v412 = vpop.f32.mrf.mxu0
        %v413 = vadd.f32 0.0, %v412
        %v414 = vpop.f32.mrf.mxu0
        %v415 = vpop.f32.mrf.mxu0
        %416 = vdwg.mxu0
        %v417 = vld [vmem:[#allocation2] sm:$0x3]
        %v419 = vlaneseq
        %v420 = vshrl.u32 %v419, 7
        %v421 = vsub.s32 0, %v420
        %v422 = vrot.slane %v417, %v421
        %v423 = vlaneseq
        %v424 = vshrl.u32 %v423, 7
        %v425 = vsub.s32 1, %v424
        %v426 = vrot.slane %v417, %v425
        %v429 = vmul.f32 %v411, %v422
        %v430 = vmul.f32 %v413, %v426
        %v431 = vmax.f32 %v429, -63.936
        %v432 = vmax.f32 %v430, -63.936
        %v433 = vmin.f32 %v431, 63.936
        %v434 = vmin.f32 %v432, 63.936
        %s435 = smul.u32 %s25, 256
        %v436 = vlaneseq
        %v437 = vand.u32 %v436, 127
        %v438 = vadd.s32 %v437, 128
        %v439 = vstv %s435
        %v440 = vadd.s32 %v439, %v437
        %v441 = vadd.s32 %v439, %v438
        %442 = vset.pattern.permute.xlu0 0
        %443 = vperm.xlu0 %442, %v345
        %v444 = vpop.permute.xlu0 %443
        %vm445 = vcmp.eq.s32.totalorder %v440, %v444
        %vm446 = vcmp.eq.s32.totalorder %v441, %v444
        %448 = vset.pattern.permute.xlu0 0
        %449 = vperm.xlu0 %448, %v347
        %v450 = vpop.permute.xlu0 %449
        %v452 = vsel %vm445, %v450, %v433
        %v453 = vsel %vm446, %v450, %v434
        %454 = vst [vmem:[%s229] sm:$0xff] %v452
        %455 = vst [vmem:[%s229 + $0x8] sm:$0xff] %v453
        %s456 = sand.u32 %s132, 1
        %s457 = scalar_lea.sflag [#allocation5], %s456
        %s458 = sand.u32 %s132, 1
        %s459 = smul.addr %s458, 16
        %s460 = scalar_lea.vmem [#allocation6], %s459
        // Predicated region
        $region45: #{tpu_custom_call.1} parent=35 // pred_check
          %p461 = pneg %p142
        $region46: #{tpu_custom_call.1} parent=35 // pred_check_branch
          %463 = sbr.rel (%p461) target = $region48
        $region47: #{tpu_custom_call.1} parent=35 // pred_region
          %s464 = smul.u32 2, %s25
          %s466 = ssub.s32 256, 256
          %467 = vsyncadd %s457, %s466
          %s468 = smul.addr %s26, 8
          %s469 = sadd.s32 %s464, %s468
          %s470 = smul.addr %s469, 128
          %s471 = scalar_lea.hbm %s4, %s470
          %s473 = sshll.u32 %s460, 4
          %s474 = int_to_ptr.vmem [resolvable:$true] %s473
          %476 = dma.vmem_to_hbm [thread:$0]  %s474, 256, %s471, %s457
        $region48: #{tpu_custom_call.1} parent=35 // pred_fallthru
          _
      $region36: #{tpu_custom_call.1} parent=5 // pred_fallthru
        _
      %p477 = scmp.le.s32.totalorder 2, %s16
      // Predicated region
      $region49: #{tpu_custom_call.1} parent=5 // pred_check
        %p478 = pneg %p477
      $region50: #{tpu_custom_call.1} parent=5 // pred_check_branch
        %480 = sbr.rel (%p478) target = $region52
      $region51: #{tpu_custom_call.1} parent=5 // pred_region
        %s481 = ssub.s32 %s16, 2
        // Predicated region
        $region53: #{tpu_custom_call.1} parent=51 // pred_check
          %p482 = pneg %p148
        $region54: #{tpu_custom_call.1} parent=51 // pred_check_branch
          %484 = sbr.rel (%p482) target = $region56
        $region55: #{tpu_custom_call.1} parent=51 // pred_region
          %s485 = sand.u32 %s133, 1
          %s486 = scalar_lea.sflag [#allocation5], %s485
          %s487 = sand.u32 %s133, 1
          %s488 = smul.addr %s487, 16
          %s489 = scalar_lea.vmem [#allocation6], %s488
          %490 = dma.done %s486, 256
        $region56: #{tpu_custom_call.1} parent=51 // pred_fallthru
          _
      $region52: #{tpu_custom_call.1} parent=5 // pred_fallthru
        _
    $region6: #{tpu_custom_call.1} parent=1 // loop_footer
      %s20 = sadd.s32 1, %s16
    $region7: #{tpu_custom_call.1} parent=1 // loop_footer_branch
      %15 = sbr.rel target = $region3
    $region8: #{tpu_custom_call.1} parent=1 // loop_exit
      _
    %491 = vsyncpa [#allocation4], 1
    %s492 = scalar_lea.sflag [#allocation4], 1
    %493 = vsyncpa %s492, 1
    %494 = vsyncpa [#allocation5], 1
    %s495 = scalar_lea.sflag [#allocation5], 1
    %496 = vsyncpa %s495, 1

</llo_original>
